<compile_context>
chip_gen: v6e
topology: v6e:2x2x1
jax: 0.10.0
libtpu: 0.0.40
codegen_flags: <defaults>
</compile_context>

<pallas_src>
import functools
import math

import jax
import jax.numpy as jnp
from jax.experimental import pallas as pl
from jax.experimental.pallas import tpu as pltpu

_NEG_BIG = -1e30


def _elementwise_dtype():
    """bf16 element-wise path only on chips with a bf16 VPU/EUP (v6e and newer)."""
    try:
        kind = jax.devices()[0].device_kind.lower()
    except Exception:
        return jnp.float32
    if any(tag in kind for tag in ("v2", "v3", "v4", "v5")):
        return jnp.float32
    return jnp.bfloat16


# --------------------------------------------------------------------------- #
# Kernel 1: projection + per-node attention scores (prologue, runs once)
# --------------------------------------------------------------------------- #
def gat_project_kernel(h_ref, w_ref, a_src_ref, a_dst_ref,
                       wh_ref, s_src_ref, s_dst_ref):
    # h: (TM, Fin) f32 | w: (Fin, Fp) f32 | a_*: (1, Fp) f32
    wh = jnp.dot(h_ref[...], w_ref[...], preferred_element_type=jnp.float32)
    # VPU reduces instead of degenerate 1-column MXU matmuls.
    s_src_ref[...] = jnp.sum(wh * a_src_ref[...], axis=-1, keepdims=True)
    s_dst_ref[...] = jnp.sum(wh * a_dst_ref[...], axis=-1, keepdims=True)
    # bf16 copy of Wh feeds the big attn @ Wh matmul; the score path stays f32.
    wh_ref[...] = wh.astype(jnp.bfloat16)
    # NOTE: W / a_src / a_dst are constant-index blocks; they could be
    # single-buffered (pipeline_mode=pl.Buffered(1)) to reclaim a little VMEM,
    # but this is a tiny prologue so the default pipelining is kept.


# --------------------------------------------------------------------------- #
# Kernel 2: column-tiled online masked softmax + spmm (hot N^2 loop)
# --------------------------------------------------------------------------- #
def gat_attn_kernel(s_src_ref, s_dst_ref, adj_ref, wh_ref, o_ref,
                    m_sc, l_sc, acc_sc, *, alpha, elem_dtype):
    # s_src: (TM, 1) f32 | s_dst: (1, TK) f32 | adj: (TM, TK) int8
    # wh: (TK, Fp) bf16  | o: (TM, Fp) f32
    k = pl.program_id(1)

    @pl.when(k == 0)
    def _():
        m_sc[...] = jnp.full(m_sc.shape, _NEG_BIG, m_sc.dtype)
        l_sc[...] = jnp.zeros(l_sc.shape, l_sc.dtype)
        acc_sc[...] = jnp.zeros(acc_sc.shape, acc_sc.dtype)

    ed = elem_dtype
    # Attention logits for this block; element-wise work in `ed` (bf16 on
    # v6e/v7x halves the binding VALU/EUP time, f32 on v5e).
    e = s_src_ref[...].astype(ed) + s_dst_ref[...].astype(ed)       # (TM, TK)
    e = jnp.maximum(e, alpha * e)                                    # LeakyReLU, 0 < alpha < 1

    # Online-softmax running max: f32 state, rounded to `ed` so exp(e - m) and
    # the rescale factor exp(m_prev - m_new) stay mutually consistent.
    m_prev = m_sc[...]                                               # (TM, 1) f32
    m_blk = jnp.max(e, axis=-1, keepdims=True).astype(jnp.float32)
    m_new = jnp.maximum(m_prev, m_blk).astype(ed).astype(jnp.float32)
    corr = jnp.exp(m_prev - m_new)                                   # (TM, 1) f32

    p = jnp.exp(e - m_new.astype(ed))                                # (TM, TK) ed
    # Mask as a multiplicative 0/1 gate after exp (cheaper than compare+select
    # on the saturated VPU slot; the max over unmasked logits is harmless since
    # softmax is shift-invariant).  Adjacency stays int8 in HBM.
    p = p * adj_ref[...].astype(jnp.float32).astype(ed)

    # f32 reductions / accumulation; bf16 operands on the MXU.
    l_sc[...] = corr * l_sc[...] + jnp.sum(p.astype(jnp.float32),
                                           axis=-1, keepdims=True)
    acc_sc[...] = corr * acc_sc[...] + jnp.dot(
        p.astype(jnp.bfloat16), wh_ref[...], preferred_element_type=jnp.float32)
    m_sc[...] = m_new

    @pl.when(k == pl.num_programs(1) - 1)
    def _():
        l = l_sc[...]
        # EUP reciprocal; rows with no edges (l == 0) produce exactly 0.
        inv = jnp.where(l > 0.0, pl.reciprocal(l, approx=True), 0.0)
        h_prime = acc_sc[...] * inv
        # ELU (concat=True branch), expm1 for precision near 0.
        o_ref[...] = jnp.where(h_prime > 0, h_prime, jnp.expm1(h_prime))


# --------------------------------------------------------------------------- #
# Wrapper
# --------------------------------------------------------------------------- #
def prepare_gat_params(W_weight, a_weight):
    """Pad parameters so the kernels' matmul/output lane dim is a multiple of 128."""
    Fout, Fin = W_weight.shape
    Fp = ((Fout + 127) // 128) * 128
    W_t = jnp.zeros((Fin, Fp), jnp.float32).at[:, :Fout].set(W_weight.T)
    a_src = jnp.zeros((1, Fp), jnp.float32).at[0, :Fout].set(a_weight[0, :Fout])
    a_dst = jnp.zeros((1, Fp), jnp.float32).at[0, :Fout].set(a_weight[0, Fout:])
    return W_t, a_src, a_dst, Fout


def gat_layer(h, adj_i8, W_t, a_src, a_dst, out_features, *, alpha=0.2,
              block_rows=256, block_cols=512, elementwise_dtype=None):
    """h: (N, Fin) f32, adj_i8: (N, N) int8 0/1, W_t: (Fin, Fp), a_*: (1, Fp)."""
    # LeakyReLU via max(e, alpha * e) is only valid for 0 < alpha < 1.
    assert 0.0 < alpha < 1.0, "alpha must be in (0, 1)"

    N, Fin = h.shape
    Fp = W_t.shape[1]
    if elementwise_dtype is None:
        elementwise_dtype = _elementwise_dtype()

    TM = int(block_rows)
    TK = int(block_cols)
    # Pad the node dimension so it tiles evenly along both grid axes; the grid
    # never collapses to a single step and per-step VMEM is independent of N.
    L = TM * TK // math.gcd(TM, TK)
    Np = ((N + L - 1) // L) * L
    if Np != N:
        h = jnp.zeros((Np, Fin), h.dtype).at[:N].set(h)
        adj_i8 = jnp.zeros((Np, Np), adj_i8.dtype).at[:N, :N].set(adj_i8)

    # ---- prologue: Wh (bf16), per-node scores (f32) ----
    wh, s_src, s_dst = pl.pallas_call(
        gat_project_kernel,
        out_shape=(jax.ShapeDtypeStruct((Np, Fp), jnp.bfloat16),
                   jax.ShapeDtypeStruct((Np, 1), jnp.float32),
                   jax.ShapeDtypeStruct((Np, 1), jnp.float32)),
        grid=(Np // TM,),
        in_specs=[pl.BlockSpec((TM, Fin), lambda i: (i, 0)),
                  pl.BlockSpec((Fin, Fp), lambda i: (0, 0)),
                  pl.BlockSpec((1, Fp), lambda i: (0, 0)),
                  pl.BlockSpec((1, Fp), lambda i: (0, 0))],
        out_specs=(pl.BlockSpec((TM, Fp), lambda i: (i, 0)),
                   pl.BlockSpec((TM, 1), lambda i: (i, 0)),
                   pl.BlockSpec((TM, 1), lambda i: (i, 0))),
        compiler_params=pltpu.CompilerParams(
            dimension_semantics=("parallel",)),
    )(h, W_t, a_src, a_dst)

    # (Np, 1) -> (1, Np) is a layout-preserving reshape (free), not a transpose.
    s_dst_row = s_dst.reshape(1, Np)

    # VMEM budget for the chosen tiles (independent of N thanks to column tiling).
    esz = jnp.dtype(elementwise_dtype).itemsize
    vmem_need = (2 * TM * TK * 1            # adj int8 tile, double-buffered
                 + 2 * TK * Fp * 2          # Wh column tile (bf16), double-buffered
                 + 2 * TM * Fp * 4          # output tile, double-buffered
                 + TM * Fp * 4 + 8 * TM     # acc / m / l scratch
                 + 4 * TM * TK * esz        # element-wise temporaries (e, p, mask)
                 + 2 * TM * TK * 4          # f32 temporaries (sum upcast, ...)
                 + 2 * (TM + TK) * 4)       # score vectors
    vmem_limit = int(min(96 * 1024 * 1024, max(32 * 1024 * 1024, 2 * vmem_need)))

    cost = pl.CostEstimate(
        flops=2 * Np * Np * Fp + 10 * Np * Np,
        transcendentals=Np * Np,
        bytes_accessed=Np * Np * 1 + (Np // TM) * Np * Fp * 2 + Np * Fp * 4 + 8 * Np,
    )

    out_padded = pl.pallas_call(
        functools.partial(gat_attn_kernel, alpha=alpha,
                          elem_dtype=elementwise_dtype),
        out_shape=jax.ShapeDtypeStruct((Np, Fp), jnp.float32),
        grid=(Np // TM, Np // TK),
        in_specs=[pl.BlockSpec((TM, 1), lambda i, k: (i, 0)),     # s_src row tile
                  pl.BlockSpec((1, TK), lambda i, k: (0, k)),     # s_dst column tile
                  pl.BlockSpec((TM, TK), lambda i, k: (i, k)),    # adj block (int8)
                  pl.BlockSpec((TK, Fp), lambda i, k: (k, 0))],   # Wh column tile (bf16)
        out_specs=pl.BlockSpec((TM, Fp), lambda i, k: (i, 0)),
        scratch_shapes=[pltpu.VMEM((TM, 1), jnp.float32),         # running max
                        pltpu.VMEM((TM, 1), jnp.float32),         # running denom
                        pltpu.VMEM((TM, Fp), jnp.float32)],       # accumulator
        compiler_params=pltpu.CompilerParams(
            dimension_semantics=("parallel", "arbitrary"),
            vmem_limit_bytes=vmem_limit),
        cost_estimate=cost,
    )(s_src, s_dst_row, adj_i8, wh)

    # Lane-dense (128-wide) store inside the kernel; slice the padded rows /
    # logical feature width outside.  (Could be bf16 if downstream accepts it.)
    return out_padded[:N, :out_features]


# --------------------------------------------------------------------------- #
# Pure-JAX f32 reference (identical masked-softmax semantics)
# --------------------------------------------------------------------------- #
def gat_reference(h, adj_mask, W_weight, a_weight, alpha=0.2):
    Fout = W_weight.shape[0]
    Wh = h @ W_weight.T
    a1 = a_weight[0, :Fout]
    a2 = a_weight[0, Fout:]
    e = (Wh @ a1[:, None]) + (Wh @ a2[:, None]).T
    e = jnp.where(e > 0, e, alpha * e)
    e_m = jnp.where(adj_mask, e, _NEG_BIG)
    row_max = jnp.max(e_m, axis=-1, keepdims=True)
    p = jnp.where(adj_mask, jnp.exp(e_m - row_max), 0.0)
    denom = jnp.sum(p, axis=-1, keepdims=True)
    attn = p / jnp.where(denom > 0, denom, 1.0)
    h_prime = attn @ Wh
    return jnp.where(h_prime > 0, h_prime, jnp.expm1(h_prime))


def xavier_uniform(key, shape):
    fan_out, fan_in = shape
    bound = (6.0 / (fan_in + fan_out)) ** 0.5
    return jax.random.uniform(key, shape, jnp.float32, -bound, bound)


if __name__ == "__main__":
    N, Fin, Fout = 256, 32, 32
    alpha = 0.2  # LeakyReLU negative slope; dropout = 0.0 (eval mode)

    key = jax.random.PRNGKey(0)
    k_h, k_adj, k_w, k_a = jax.random.split(key, 4)

    # Node features
    h = jax.random.normal(k_h, (N, Fin), jnp.float32)

    # Random sparse adjacency + self-loops; shipped to the kernel as int8.
    adj_mask = (jax.random.uniform(k_adj, (N, N)) < 0.10) | jnp.eye(N, dtype=bool)
    adj_i8 = adj_mask.astype(jnp.int8)

    # Parameters (xavier-uniform, PyTorch shapes)
    W_weight = xavier_uniform(k_w, (Fout, Fin))       # nn.Linear(Fin, Fout).weight
    a_weight = xavier_uniform(k_a, (1, 2 * Fout))     # nn.Linear(2*Fout, 1).weight

    W_t, a_src, a_dst, _ = prepare_gat_params(W_weight, a_weight)

    # Small tiles so the test exercises multiple row tiles AND multiple online-
    # softmax column steps (production sizes: see per-generation guidance above).
    out = gat_layer(h, adj_i8, W_t, a_src, a_dst, Fout, alpha=alpha,
                    block_rows=128, block_cols=128)
    out = jax.block_until_ready(out)

    ref = gat_reference(h, adj_mask, W_weight, a_weight, alpha=alpha)
    assert out.shape == (N, Fout)
    # Tolerance covers bf16 attention logits (on v6e/v7x), bf16 attn@Wh
    # operands, and the approximate reciprocal.
    assert jnp.allclose(out, ref, atol=7.5e-2, rtol=7.5e-2), \
        "mismatch vs JAX reference"

    print("KERNEL_OK")
</pallas_src>

<mosaic_0001>
module attributes {stable_mosaic.version = 11 : i64} {
  func.func @gat_project_kernel(%arg0: i32, %arg1: memref<128x32xf32, #tpu.memory_space<vmem>>, %arg2: memref<32x128xf32, #tpu.memory_space<vmem>>, %arg3: memref<1x128xf32, #tpu.memory_space<vmem>>, %arg4: memref<1x128xf32, #tpu.memory_space<vmem>>, %arg5: memref<128x128xbf16, #tpu.memory_space<vmem>>, %arg6: memref<128x1xf32, #tpu.memory_space<vmem>>, %arg7: memref<128x1xf32, #tpu.memory_space<vmem>>) attributes {dimension_semantics = [#tpu.dimension_semantics<parallel>], iteration_bounds = array<i64: 2>, scalar_prefetch = 0 : i64, scratch_operands = 0 : i64, tpu.core_type = #tpu.core_type<tc>, window_params = [{transform_indices = @transform_0, window_bounds = array<i64: 128, 32>}, {pipeline_mode = #tpu.pipeline_mode<synchronous>, transform_indices = @transform_1, window_bounds = array<i64: 32, 128>}, {pipeline_mode = #tpu.pipeline_mode<synchronous>, transform_indices = @transform_2, window_bounds = array<i64: 1, 128>}, {pipeline_mode = #tpu.pipeline_mode<synchronous>, transform_indices = @transform_3, window_bounds = array<i64: 1, 128>}, {transform_indices = @transform_4, window_bounds = array<i64: 128, 128>}, {transform_indices = @transform_5, window_bounds = array<i64: 128, 1>}, {transform_indices = @transform_6, window_bounds = array<i64: 128, 1>}]} {
    %c0 = arith.constant 0 : index
    %c0_0 = arith.constant 0 : index
    %0 = vector.load %arg1[%c0, %c0_0] : memref<128x32xf32, #tpu.memory_space<vmem>>, vector<128x32xf32>
    %c0_1 = arith.constant 0 : index
    %c0_2 = arith.constant 0 : index
    %1 = vector.load %arg2[%c0_1, %c0_2] : memref<32x128xf32, #tpu.memory_space<vmem>>, vector<32x128xf32>
    %cst = arith.constant dense<0.000000e+00> : vector<128x128xf32>
    %2 = tpu.matmul %0, %1, %cst {dimension_numbers = #tpu.dot_dimension_numbers<[1], [0], [0], [1], [0, 0, 1, 1], [], []>} : vector<128x32xf32>, vector<32x128xf32>, vector<128x128xf32> -> vector<128x128xf32>
    %c0_3 = arith.constant 0 : index
    %c0_4 = arith.constant 0 : index
    %3 = vector.load %arg3[%c0_3, %c0_4] : memref<1x128xf32, #tpu.memory_space<vmem>>, vector<1x128xf32>
    %4 = vector.broadcast %3 : vector<1x128xf32> to vector<128x128xf32>
    %5 = arith.mulf %2, %4 : vector<128x128xf32>
    %cst_5 = arith.constant dense<0.000000e+00> : vector<128xf32>
    %6 = vector.multi_reduction <add>, %5, %cst_5 [1] : vector<128x128xf32> to vector<128xf32>
    %7 = vector.shape_cast %6 : vector<128xf32> to vector<128x1xf32>
    %c0_6 = arith.constant 0 : index
    %c0_7 = arith.constant 0 : index
    %8 = vector.load %arg6[%c0_6, %c0_7] : memref<128x1xf32, #tpu.memory_space<vmem>>, vector<128x1xf32>
    tpu.vector_store %arg6[%c0_6, %c0_7], %7 {strides = array<i32>} : memref<128x1xf32, #tpu.memory_space<vmem>>, vector<128x1xf32>,
    %c0_8 = arith.constant 0 : index
    %c0_9 = arith.constant 0 : index
    %9 = vector.load %arg4[%c0_8, %c0_9] : memref<1x128xf32, #tpu.memory_space<vmem>>, vector<1x128xf32>
    %10 = vector.broadcast %9 : vector<1x128xf32> to vector<128x128xf32>
    %11 = arith.mulf %2, %10 : vector<128x128xf32>
    %cst_10 = arith.constant dense<0.000000e+00> : vector<128xf32>
    %12 = vector.multi_reduction <add>, %11, %cst_10 [1] : vector<128x128xf32> to vector<128xf32>
    %13 = vector.shape_cast %12 : vector<128xf32> to vector<128x1xf32>
    %c0_11 = arith.constant 0 : index
    %c0_12 = arith.constant 0 : index
    %14 = vector.load %arg7[%c0_11, %c0_12] : memref<128x1xf32, #tpu.memory_space<vmem>>, vector<128x1xf32>
    tpu.vector_store %arg7[%c0_11, %c0_12], %13 {strides = array<i32>} : memref<128x1xf32, #tpu.memory_space<vmem>>, vector<128x1xf32>,
    %15 = arith.truncf %2 : vector<128x128xf32> to vector<128x128xbf16>
    %c0_13 = arith.constant 0 : index
    %c0_14 = arith.constant 0 : index
    %16 = vector.load %arg5[%c0_13, %c0_14] : memref<128x128xbf16, #tpu.memory_space<vmem>>, vector<128x128xbf16>
    tpu.vector_store %arg5[%c0_13, %c0_14], %15 {strides = array<i32>} : memref<128x128xbf16, #tpu.memory_space<vmem>>, vector<128x128xbf16>,
    return
  }
  func.func @transform_0(%arg0: i32) -> (i32, i32) {
    %c0_i32 = arith.constant 0 : i32
    %c0_i32_0 = arith.constant 0 : i32
    return %arg0, %c0_i32 : i32, i32
  }
  func.func @transform_1(%arg0: i32) -> (i32, i32) {
    %c0_i32 = arith.constant 0 : i32
    %c0_i32_0 = arith.constant 0 : i32
    %c0_i32_1 = arith.constant 0 : i32
    return %c0_i32, %c0_i32_0 : i32, i32
  }
  func.func @transform_2(%arg0: i32) -> (i32, i32) {
    %c0_i32 = arith.constant 0 : i32
    %c0_i32_0 = arith.constant 0 : i32
    %c0_i32_1 = arith.constant 0 : i32
    return %c0_i32, %c0_i32_0 : i32, i32
  }
  func.func @transform_3(%arg0: i32) -> (i32, i32) {
    %c0_i32 = arith.constant 0 : i32
    %c0_i32_0 = arith.constant 0 : i32
    %c0_i32_1 = arith.constant 0 : i32
    return %c0_i32, %c0_i32_0 : i32, i32
  }
  func.func @transform_4(%arg0: i32) -> (i32, i32) {
    %c0_i32 = arith.constant 0 : i32
    %c0_i32_0 = arith.constant 0 : i32
    return %arg0, %c0_i32 : i32, i32
  }
  func.func @transform_5(%arg0: i32) -> (i32, i32) {
    %c0_i32 = arith.constant 0 : i32
    %c0_i32_0 = arith.constant 0 : i32
    return %arg0, %c0_i32 : i32, i32
  }
  func.func @transform_6(%arg0: i32) -> (i32, i32) {
    %c0_i32 = arith.constant 0 : i32
    %c0_i32_0 = arith.constant 0 : i32
    return %arg0, %c0_i32 : i32, i32
  }
}

</mosaic_0001>

<llo_original>
// kernel: tpu_custom_call.1
$region0: #{tpu_custom_call.1}
  #allocation0 [shape = 'u32[]', space=smem, size = 0x4, offset = 0x4, fixed_abs, tag = 'smem constant byte address 0x4 - core index']
  #allocation1 [shape = 'u32[144,128]{1,0:T(1,128)}', space=vmem, size = 0x12000, scoped, tag = 'internal scratch']
  %s0 = inlined_call_operand.vmem [shape: f32[256,32], index: 0, kind: input, shape index: {}]
  %s1 = inlined_call_operand.vmem [shape: f32[32,128], index: 1, kind: input, shape index: {}]
  %s2 = inlined_call_operand.vmem [shape: f32[1,128], index: 2, kind: input, shape index: {}]
  %s3 = inlined_call_operand.vmem [shape: f32[1,128], index: 3, kind: input, shape index: {}]
  %s4 = inlined_call_operand.hbm [shape: bf16[256,128], index: 4, kind: output, shape index: {0}]
  %s5 = inlined_call_operand.vmem [shape: f32[256,1], index: 5, kind: output, shape index: {1}]
  %s6 = inlined_call_operand.vmem [shape: f32[256,1], index: 6, kind: output, shape index: {2}]
  %7 = xla_tuple %s4, %s5, %s6
  %s8 = sld [smem:[#allocation0]]
  $region65: #{tpu_custom_call.1} parent=0
    _
  %s10 = ssub.s32 1, %s8
  %s11 = scalar_select 0, %s10, %s8
  $region1: #{tpu_custom_call.1} parent=0
    #allocation2 [shape = 'u8[65536]{0}', space=vmem, size = 0x10000, scoped, tag = 'output window, operand 0']
    #allocation3 [shape = 's32[2]{0}', space=sflag, size = 0x8, scoped, tag = 'scoped memory for tpu_custom_call.1']
    %12 = vsyncpa [#allocation3], 0
    %s13 = scalar_lea.sflag [#allocation3], 1
    %14 = vsyncpa %s13, 0
    loop: start=0, step=1, limit=4
    $region2: #{tpu_custom_call.1} parent=1 // loop_pre_header
      _
    $region3: #{tpu_custom_call.1} parent=1 // loop_header
      %s16 = sphi 0, %s20
      %p17 = scmp.ge.s32.totalorder %s16, 4
      %s26 = sphi 0, %s28
      %s29 = sphi 0, %s26
      %s30 = sphi 0, %s29
      %s46 = sphi 0, %s30
      %s50 = sphi 0, %s50
      %s52 = sphi 0, %s50
      %s53 = sphi 0, %s52
      %s67 = sphi 0, %s53
      %s71 = sphi 0, %s71
      %s73 = sphi 0, %s71
      %s74 = sphi 0, %s73
      %s88 = sphi 0, %s74
      %s92 = sphi 0, %s92
      %s94 = sphi 0, %s92
      %s95 = sphi 0, %s94
      %s109 = sphi 0, %s95
      %s115 = sphi 0, %s117
      %s118 = sphi 0, %s115
      %s119 = sphi 0, %s118
      %s135 = sphi 0, %s119
      %s141 = sphi 0, %s143
      %s144 = sphi 0, %s141
      %s145 = sphi 0, %s144
      %s161 = sphi 0, %s145
      %s167 = sphi 0, %s169
      %s170 = sphi 0, %s167
      %s171 = sphi 0, %s170
      %s187 = sphi 0, %s171
    $region4: #{tpu_custom_call.1} parent=1 // loop_header_branch
      %19 = sbr.rel (%p17) target = $region8
    $region5: #{tpu_custom_call.1} parent=1 // loop_body
      %s21 = ssub.s32 %s16, 1
      %s22 = ssub.s32 %s16, 2
      %s23 = sadd.s32 %s16, 1
      %s24 = ssub.s32 %s16, %s23
      %p25 = scmp.eq.s32.totalorder %s24, 0
      %s27 = sadd.s32 %s26, 1
      %s28 = scalar_select %p25, %s26, %s27
      %p31 = pneg %p25
      %p32 = scmp.eq.s32.totalorder %s16, 1
      %p33 = por %p31, %p32
      %p34 = scmp.ne.s32.totalorder %s26, %s29
      %p35 = scmp.eq.s32.totalorder %s16, 0
      %p36 = por %p34, %p35
      %p37 = scmp.ne.s32.totalorder %s26, %s29
      %p38 = scmp.eq.s32.totalorder %s21, 1
      %p39 = por %p37, %p38
      %p40 = scmp.ne.s32.totalorder %s29, %s30
      %p41 = scmp.eq.s32.totalorder %s21, 0
      %p42 = por %p40, %p41
      %p43 = scmp.ne.s32.totalorder %s29, %s30
      %p44 = scmp.eq.s32.totalorder %s22, 1
      %p45 = por %p43, %p44
      %p47 = scmp.ne.s32.totalorder %s30, %s46
      %p48 = scmp.eq.s32.totalorder %s22, 0
      %p49 = por %p47, %p48
      %s51 = sadd.s32 %s50, 1
      %p54 = scmp.eq.s32.totalorder %s16, 1
      %p55 = scmp.ne.s32.totalorder %s50, %s52
      %p56 = scmp.eq.s32.totalorder %s16, 0
      %p57 = por %p55, %p56
      %p58 = scmp.ne.s32.totalorder %s50, %s52
      %p59 = scmp.eq.s32.totalorder %s21, 1
      %p60 = por %p58, %p59
      %p61 = scmp.ne.s32.totalorder %s52, %s53
      %p62 = scmp.eq.s32.totalorder %s21, 0
      %p63 = por %p61, %p62
      %p64 = scmp.ne.s32.totalorder %s52, %s53
      %p65 = scmp.eq.s32.totalorder %s22, 1
      %p66 = por %p64, %p65
      %p68 = scmp.ne.s32.totalorder %s53, %s67
      %p69 = scmp.eq.s32.totalorder %s22, 0
      %p70 = por %p68, %p69
      %s72 = sadd.s32 %s71, 1
      %p75 = scmp.eq.s32.totalorder %s16, 1
      %p76 = scmp.ne.s32.totalorder %s71, %s73
      %p77 = scmp.eq.s32.totalorder %s16, 0
      %p78 = por %p76, %p77
      %p79 = scmp.ne.s32.totalorder %s71, %s73
      %p80 = scmp.eq.s32.totalorder %s21, 1
      %p81 = por %p79, %p80
      %p82 = scmp.ne.s32.totalorder %s73, %s74
      %p83 = scmp.eq.s32.totalorder %s21, 0
      %p84 = por %p82, %p83
      %p85 = scmp.ne.s32.totalorder %s73, %s74
      %p86 = scmp.eq.s32.totalorder %s22, 1
      %p87 = por %p85, %p86
      %p89 = scmp.ne.s32.totalorder %s74, %s88
      %p90 = scmp.eq.s32.totalorder %s22, 0
      %p91 = por %p89, %p90
      %s93 = sadd.s32 %s92, 1
      %p96 = scmp.eq.s32.totalorder %s16, 1
      %p97 = scmp.ne.s32.totalorder %s92, %s94
      %p98 = scmp.eq.s32.totalorder %s16, 0
      %p99 = por %p97, %p98
      %p100 = scmp.ne.s32.totalorder %s92, %s94
      %p101 = scmp.eq.s32.totalorder %s21, 1
      %p102 = por %p100, %p101
      %p103 = scmp.ne.s32.totalorder %s94, %s95
      %p104 = scmp.eq.s32.totalorder %s21, 0
      %p105 = por %p103, %p104
      %p106 = scmp.ne.s32.totalorder %s94, %s95
      %p107 = scmp.eq.s32.totalorder %s22, 1
      %p108 = por %p106, %p107
      %p110 = scmp.ne.s32.totalorder %s95, %s109
      %p111 = scmp.eq.s32.totalorder %s22, 0
      %p112 = por %p110, %p111
      %s113 = ssub.s32 %s16, %s23
      %p114 = scmp.eq.s32.totalorder %s113, 0
      %s116 = sadd.s32 %s115, 1
      %s117 = scalar_select %p114, %s115, %s116
      %p120 = pneg %p114
      %p121 = scmp.eq.s32.totalorder %s16, 1
      %p122 = por %p120, %p121
      %p123 = scmp.ne.s32.totalorder %s115, %s118
      %p124 = scmp.eq.s32.totalorder %s16, 0
      %p125 = por %p123, %p124
      %p126 = scmp.ne.s32.totalorder %s115, %s118
      %p127 = scmp.eq.s32.totalorder %s21, 1
      %p128 = por %p126, %p127
      %p129 = scmp.ne.s32.totalorder %s118, %s119
      %p130 = scmp.eq.s32.totalorder %s21, 0
      %p131 = por %p129, %p130
      %p132 = scmp.ne.s32.totalorder %s118, %s119
      %p133 = scmp.eq.s32.totalorder %s22, 1
      %p134 = por %p132, %p133
      %p136 = scmp.ne.s32.totalorder %s119, %s135
      %p137 = scmp.eq.s32.totalorder %s22, 0
      %p138 = por %p136, %p137
      %s139 = ssub.s32 %s16, %s23
      %p140 = scmp.eq.s32.totalorder %s139, 0
      %s142 = sadd.s32 %s141, 1
      %s143 = scalar_select %p140, %s141, %s142
      %p146 = pneg %p140
      %p147 = scmp.eq.s32.totalorder %s16, 1
      %p148 = por %p146, %p147
      %p149 = scmp.ne.s32.totalorder %s141, %s144
      %p150 = scmp.eq.s32.totalorder %s16, 0
      %p151 = por %p149, %p150
      %p152 = scmp.ne.s32.totalorder %s141, %s144
      %p153 = scmp.eq.s32.totalorder %s21, 1
      %p154 = por %p152, %p153
      %p155 = scmp.ne.s32.totalorder %s144, %s145
      %p156 = scmp.eq.s32.totalorder %s21, 0
      %p157 = por %p155, %p156
      %p158 = scmp.ne.s32.totalorder %s144, %s145
      %p159 = scmp.eq.s32.totalorder %s22, 1
      %p160 = por %p158, %p159
      %p162 = scmp.ne.s32.totalorder %s145, %s161
      %p163 = scmp.eq.s32.totalorder %s22, 0
      %p164 = por %p162, %p163
      %s165 = ssub.s32 %s16, %s23
      %p166 = scmp.eq.s32.totalorder %s165, 0
      %s168 = sadd.s32 %s167, 1
      %s169 = scalar_select %p166, %s167, %s168
      %p172 = pneg %p166
      %p173 = scmp.eq.s32.totalorder %s16, 1
      %p174 = por %p172, %p173
      %p175 = scmp.ne.s32.totalorder %s167, %s170
      %p176 = scmp.eq.s32.totalorder %s16, 0
      %p177 = por %p175, %p176
      %p178 = scmp.ne.s32.totalorder %s167, %s170
      %p179 = scmp.eq.s32.totalorder %s21, 1
      %p180 = por %p178, %p179
      %p181 = scmp.ne.s32.totalorder %s170, %s171
      %p182 = scmp.eq.s32.totalorder %s21, 0
      %p183 = por %p181, %p182
      %p184 = scmp.ne.s32.totalorder %s170, %s171
      %p185 = scmp.eq.s32.totalorder %s22, 1
      %p186 = por %p184, %p185
      %p188 = scmp.ne.s32.totalorder %s171, %s187
      %p189 = scmp.eq.s32.totalorder %s22, 0
      %p190 = por %p188, %p189
      %p191 = scmp.le.s32.totalorder 1, %s16
      %p192 = scmp.lt.s32.totalorder %s16, 3
      %p193 = pnand %p191, %p192
      %p194 = pneg %p193
      // Predicated region
      $region9: #{tpu_custom_call.1} parent=5 // pred_check
        _
      $region10: #{tpu_custom_call.1} parent=5 // pred_check_branch
        %196 = sbr.rel (%p193) target = $region12
      $region11: #{tpu_custom_call.1} parent=5 // pred_region
        %s197 = ssub.s32 %s16, 1
        // Predicated region
        $region13: #{tpu_custom_call.1} parent=11 // pred_check
          %p198 = pneg %p63
        $region14: #{tpu_custom_call.1} parent=11 // pred_check_branch
          %200 = sbr.rel (%p198) target = $region16
        $region15: #{tpu_custom_call.1} parent=11 // pred_region
          _
        $region16: #{tpu_custom_call.1} parent=11 // pred_fallthru
          _
        // Predicated region
        $region17: #{tpu_custom_call.1} parent=11 // pred_check
          %p201 = pneg %p84
        $region18: #{tpu_custom_call.1} parent=11 // pred_check_branch
          %203 = sbr.rel (%p201) target = $region20
        $region19: #{tpu_custom_call.1} parent=11 // pred_region
          _
        $region20: #{tpu_custom_call.1} parent=11 // pred_fallthru
          _
        // Predicated region
        $region21: #{tpu_custom_call.1} parent=11 // pred_check
          %p204 = pneg %p105
        $region22: #{tpu_custom_call.1} parent=11 // pred_check_branch
          %206 = sbr.rel (%p204) target = $region24
        $region23: #{tpu_custom_call.1} parent=11 // pred_region
          _
        $region24: #{tpu_custom_call.1} parent=11 // pred_fallthru
          _
      $region12: #{tpu_custom_call.1} parent=5 // pred_fallthru
        _
      %p207 = scmp.lt.s32.totalorder %s16, 2
      // Predicated region
      $region25: #{tpu_custom_call.1} parent=5 // pred_check
        %p208 = pneg %p207
      $region26: #{tpu_custom_call.1} parent=5 // pred_check_branch
        %210 = sbr.rel (%p208) target = $region28
      $region27: #{tpu_custom_call.1} parent=5 // pred_region
        // Predicated region
        $region29: #{tpu_custom_call.1} parent=27 // pred_check
          %p211 = pneg %p36
        $region30: #{tpu_custom_call.1} parent=27 // pred_check_branch
          %213 = sbr.rel (%p211) target = $region32
        $region31: #{tpu_custom_call.1} parent=27 // pred_region
          %s214 = smul.u32 16, %s16
          %p215 = scmp.lt.s32.totalorder %s214, 31
          %s216 = scalar_select %p215, %s214, 31
          %s217 = smul.addr %s216, 8
          %s218 = scalar_lea.vmem %s0, %s217
          %s219 = smul.u32 16, %s16
        $region32: #{tpu_custom_call.1} parent=27 // pred_fallthru
          _
      $region28: #{tpu_custom_call.1} parent=5 // pred_fallthru
        _
      %p220 = scmp.le.s32.totalorder 1, %s16
      %p221 = scmp.lt.s32.totalorder %s16, 3
      %p222 = pnand %p220, %p221
      %p223 = pneg %p222
      // Predicated region
      $region33: #{tpu_custom_call.1} parent=5 // pred_check
        _
      $region34: #{tpu_custom_call.1} parent=5 // pred_check_branch
        %225 = sbr.rel (%p222) target = $region36
      $region35: #{tpu_custom_call.1} parent=5 // pred_region
        %s226 = ssub.s32 %s16, 1
        %s227 = smul.u32 16, %s21
        %p228 = scmp.lt.s32.totalorder %s227, 31
        %s229 = scalar_select %p228, %s227, 31
        %s230 = smul.addr %s229, 8
        %s231 = scalar_lea.vmem %s0, %s230
        %p232 = pneg %p42
        %p233 = pneg %p39
        %p234 = pneg %p63
        %p235 = pneg %p60
        %p236 = pneg %p84
        %p237 = pneg %p81
        %p238 = pneg %p105
        %p239 = pneg %p102
        %p240 = pneg %p131
        %p241 = pneg %p128
        %s242 = sand.u32 %s118, 1
        %s243 = scalar_lea.sflag [#allocation3], %s242
        %s244 = sand.u32 %s118, 1
        %s245 = smul.addr %s244, 64
        %s246 = scalar_lea.vmem [#allocation2], %s245
        %p247 = pneg %p157
        %p248 = pneg %p154
        %s249 = smul.u32 16, %s21
        %p250 = scmp.lt.s32.totalorder %s249, 31
        %s251 = scalar_select %p250, %s249, 31
        %s252 = smul.addr %s251, 8
        %s253 = scalar_lea.vmem %s5, %s252
        %p254 = pneg %p183
        %p255 = pneg %p180
        %s256 = smul.u32 16, %s21
        %p257 = scmp.lt.s32.totalorder %s256, 31
        %s258 = scalar_select %p257, %s256, 31
        %s259 = smul.addr %s258, 8
        %s260 = scalar_lea.vmem %s6, %s259
        %s261 = smul.u32 16, %s21
        %p262 = scmp.lt.s32.totalorder %s261, 31
        %s263 = scalar_select %p262, %s261, 31
        %s264 = smul.addr %s263, 8
        %s265 = scalar_lea.vmem %s0, %s264
        %s266 = smul.u32 16, %s21
        %s267 = smul.u32 16, %s21
        %s268 = smul.u32 16, %s21
        %p269 = scmp.lt.s32.totalorder %s268, 31
        %s270 = scalar_select %p269, %s268, 31
        %s271 = smul.addr %s270, 8
        %s272 = scalar_lea.vmem %s5, %s271
        %s273 = smul.u32 16, %s21
        %s274 = smul.u32 16, %s21
        %p275 = scmp.lt.s32.totalorder %s274, 31
        %s276 = scalar_select %p275, %s274, 31
        %s277 = smul.addr %s276, 8
        %s278 = scalar_lea.vmem %s6, %s277
        %s279 = smul.u32 16, %s21
        %v280 = vld [vmem:[%s265] sm:$0xff]
        %v281 = vld [vmem:[%s265 + $0x8] sm:$0xff]
        %v282 = vld [vmem:[%s265 + $0x10] sm:$0xff]
        %v283 = vld [vmem:[%s265 + $0x18] sm:$0xff]
        %v284 = vld [vmem:[%s265 + $0x20] sm:$0xff]
        %v285 = vld [vmem:[%s265 + $0x28] sm:$0xff]
        %v286 = vld [vmem:[%s265 + $0x30] sm:$0xff]
        %v287 = vld [vmem:[%s265 + $0x38] sm:$0xff]
        %v288 = vld [vmem:[%s265 + $0x40] sm:$0xff]
        %v289 = vld [vmem:[%s265 + $0x48] sm:$0xff]
        %v290 = vld [vmem:[%s265 + $0x50] sm:$0xff]
        %v291 = vld [vmem:[%s265 + $0x58] sm:$0xff]
        %v292 = vld [vmem:[%s265 + $0x60] sm:$0xff]
        %v293 = vld [vmem:[%s265 + $0x68] sm:$0xff]
        %v294 = vld [vmem:[%s265 + $0x70] sm:$0xff]
        %v295 = vld [vmem:[%s265 + $0x78] sm:$0xff]
        %v296 = vld [vmem:[%s1] sm:$0xff]
        %v297 = vld [vmem:[%s1 + $0x8] sm:$0xff]
        %v298 = vld [vmem:[%s1 + $0x10] sm:$0xff]
        %v299 = vld [vmem:[%s1 + $0x18] sm:$0xff]
        %vm300 = vcmask 261120
        %v302 = vsel %vm300, %v280, 0
        %v305 = vsel %vm300, %v281, 0
        %v308 = vsel %vm300, %v282, 0
        %v311 = vsel %vm300, %v283, 0
        %v314 = vsel %vm300, %v284, 0
        %v317 = vsel %vm300, %v285, 0
        %v320 = vsel %vm300, %v286, 0
        %v323 = vsel %vm300, %v287, 0
        %v326 = vsel %vm300, %v288, 0
        %v329 = vsel %vm300, %v289, 0
        %v332 = vsel %vm300, %v290, 0
        %v335 = vsel %vm300, %v291, 0
        %v338 = vsel %vm300, %v292, 0
        %v341 = vsel %vm300, %v293, 0
        %v344 = vsel %vm300, %v294, 0
        %v347 = vsel %vm300, %v295, 0
        %349 = vmatprep.subr.mxu0 0.0
        %350 = vmatpush1.msra.mxu0 0.0
        %351 = vmatprep.subr.mxu0 0.0
        %352 = vmatpush1.msra.mxu0 0.0
        %353 = vmatprep.subr.mxu0 0.0
        %354 = vmatpush1.msra.mxu0 0.0
        %355 = vmatprep.subr.mxu0 0.0
        %356 = vmatpush1.msra.mxu0 0.0
        %357 = vmatprep.subr.mxu0 0.0
        %358 = vmatpush1.msra.mxu0 0.0
        %359 = vmatprep.subr.mxu0 0.0
        %360 = vmatpush1.msra.mxu0 0.0
        %361 = vmatprep.subr.mxu0 0.0
        %362 = vmatpush1.msra.mxu0 0.0
        %363 = vmatprep.subr.mxu0 0.0
        %364 = vmatpush1.msra.mxu0 0.0
        %365 = vmatprep.subr.mxu0 0.0
        %366 = vmatpush1.msra.mxu0 0.0
        %367 = vmatprep.subr.mxu0 0.0
        %368 = vmatpush1.msra.mxu0 0.0
        %369 = vmatprep.subr.mxu0 0.0
        %370 = vmatpush1.msra.mxu0 0.0
        %371 = vmatprep.subr.mxu0 0.0
        %372 = vmatpush1.msra.mxu0 0.0
        %373 = vmatprep.subr.mxu0 0.0
        %374 = vmatpush1.msra.mxu0 %v299
        %375 = vmatprep.subr.mxu0 0.0
        %376 = vmatpush1.msra.mxu0 %v298
        %377 = vmatprep.subr.mxu0 0.0
        %378 = vmatpush1.msra.mxu0 %v297
        %379 = vmatprep.subr.mxu0 0.0
        %380 = vmatpush1.msra.mxu0 %v296
        %381 = vmatprep.subr.mxu0 0.0
        %382 = vmatpush2.msra.mxu0 0.0
        %383 = vmatprep.subr.mxu0 0.0
        %384 = vmatpush2.msra.mxu0 0.0
        %385 = vmatprep.subr.mxu0 0.0
        %386 = vmatpush2.msra.mxu0 0.0
        %387 = vmatprep.subr.mxu0 0.0
        %388 = vmatpush2.msra.mxu0 0.0
        %389 = vmatprep.subr.mxu0 0.0
        %390 = vmatpush2.msra.mxu0 0.0
        %391 = vmatprep.subr.mxu0 0.0
        %392 = vmatpush2.msra.mxu0 0.0
        %393 = vmatprep.subr.mxu0 0.0
        %394 = vmatpush2.msra.mxu0 0.0
        %395 = vmatprep.subr.mxu0 0.0
        %396 = vmatpush2.msra.mxu0 0.0
        %397 = vmatprep.subr.mxu0 0.0
        %398 = vmatpush2.msra.mxu0 0.0
        %399 = vmatprep.subr.mxu0 0.0
        %400 = vmatpush2.msra.mxu0 0.0
        %401 = vmatprep.subr.mxu0 0.0
        %402 = vmatpush2.msra.mxu0 0.0
        %403 = vmatprep.subr.mxu0 0.0
        %404 = vmatpush2.msra.mxu0 0.0
        %405 = vmatprep.subr.mxu0 0.0
        %406 = vmatpush2.msra.mxu0 0.0
        %407 = vmatprep.subr.mxu0 0.0
        %408 = vmatpush2.msra.mxu0 0.0
        %409 = vmatprep.subr.mxu0 0.0
        %410 = vmatpush2.msra.mxu0 0.0
        %411 = vmatprep.subr.mxu0 0.0
        %412 = vmatpush2.msra.mxu0 0.0
        %413 = vmatprep.mubr.f32.mxu0 0.0
        %414 = vmatmul.mubr.f32.gmra.mxu0 %v302
        %v415 = vpop.f32.mrf.mxu0
        %v416 = vadd.f32 0.0, %v415
        %v417 = vpop.f32.mrf.mxu0
        %418 = vmatprep.mubr.f32.mxu0 0.0
        %419 = vmatmul.mubr.f32.gmra.mxu0 %v305
        %v420 = vpop.f32.mrf.mxu0
        %v421 = vadd.f32 0.0, %v420
        %v422 = vpop.f32.mrf.mxu0
        %423 = vmatprep.mubr.f32.mxu0 0.0
        %424 = vmatmul.mubr.f32.gmra.mxu0 %v308
        %v425 = vpop.f32.mrf.mxu0
        %v426 = vadd.f32 0.0, %v425
        %v427 = vpop.f32.mrf.mxu0
        %428 = vmatprep.mubr.f32.mxu0 0.0
        %429 = vmatmul.mubr.f32.gmra.mxu0 %v311
        %v430 = vpop.f32.mrf.mxu0
        %v431 = vadd.f32 0.0, %v430
        %v432 = vpop.f32.mrf.mxu0
        %433 = vmatprep.mubr.f32.mxu0 0.0
        %434 = vmatmul.mubr.f32.gmra.mxu0 %v314
        %v435 = vpop.f32.mrf.mxu0
        %v436 = vadd.f32 0.0, %v435
        %v437 = vpop.f32.mrf.mxu0
        %438 = vmatprep.mubr.f32.mxu0 0.0
        %439 = vmatmul.mubr.f32.gmra.mxu0 %v317
        %v440 = vpop.f32.mrf.mxu0
        %v441 = vadd.f32 0.0, %v440
        %v442 = vpop.f32.mrf.mxu0
        %443 = vmatprep.mubr.f32.mxu0 0.0
        %444 = vmatmul.mubr.f32.gmra.mxu0 %v320
        %v445 = vpop.f32.mrf.mxu0
        %v446 = vadd.f32 0.0, %v445
        %v447 = vpop.f32.mrf.mxu0
        %448 = vmatprep.mubr.f32.mxu0 0.0
        %449 = vmatmul.mubr.f32.gmra.mxu0 %v323
        %v450 = vpop.f32.mrf.mxu0
        %v451 = vadd.f32 0.0, %v450
        %v452 = vpop.f32.mrf.mxu0
        %453 = vmatprep.mubr.f32.mxu0 0.0
        %454 = vmatmul.mubr.f32.gmra.mxu0 %v326
        %v455 = vpop.f32.mrf.mxu0
        %v456 = vadd.f32 0.0, %v455
        %v457 = vpop.f32.mrf.mxu0
        %458 = vmatprep.mubr.f32.mxu0 0.0
        %459 = vmatmul.mubr.f32.gmra.mxu0 %v329
        %v460 = vpop.f32.mrf.mxu0
        %v461 = vadd.f32 0.0, %v460
        %v462 = vpop.f32.mrf.mxu0
        %463 = vmatprep.mubr.f32.mxu0 0.0
        %464 = vmatmul.mubr.f32.gmra.mxu0 %v332
        %v465 = vpop.f32.mrf.mxu0
        %v466 = vadd.f32 0.0, %v465
        %v467 = vpop.f32.mrf.mxu0
        %468 = vmatprep.mubr.f32.mxu0 0.0
        %469 = vmatmul.mubr.f32.gmra.mxu0 %v335
        %v470 = vpop.f32.mrf.mxu0
        %v471 = vadd.f32 0.0, %v470
        %v472 = vpop.f32.mrf.mxu0
        %473 = vmatprep.mubr.f32.mxu0 0.0
        %474 = vmatmul.mubr.f32.gmra.mxu0 %v338
        %v475 = vpop.f32.mrf.mxu0
        %v476 = vadd.f32 0.0, %v475
        %v477 = vpop.f32.mrf.mxu0
        %478 = vmatprep.mubr.f32.mxu0 0.0
        %479 = vmatmul.mubr.f32.gmra.mxu0 %v341
        %v480 = vpop.f32.mrf.mxu0
        %v481 = vadd.f32 0.0, %v480
        %v482 = vpop.f32.mrf.mxu0
        %483 = vmatprep.mubr.f32.mxu0 0.0
        %484 = vmatmul.mubr.f32.gmra.mxu0 %v344
        %v485 = vpop.f32.mrf.mxu0
        %v486 = vadd.f32 0.0, %v485
        %v487 = vpop.f32.mrf.mxu0
        %488 = vmatprep.mubr.f32.mxu0 0.0
        %489 = vmatmul.mubr.f32.gmra.mxu0 %v347
        %v490 = vpop.f32.mrf.mxu0
        %v491 = vadd.f32 0.0, %v490
        %v492 = vpop.f32.mrf.mxu0
        %493 = vdwg.mxu0
        %v494 = vld [vmem:[%s2] sm:$0x1]
        %v496 = vlaneseq
        %v497 = vshrl.u32 %v496, 7
        %v498 = vsub.s32 0, %v497
        %v499 = vrot.slane %v494, %v498
        %v501 = vmul.f32 %v416, %v499
        %v502 = vmul.f32 %v421, %v499
        %v503 = vmul.f32 %v426, %v499
        %v504 = vmul.f32 %v431, %v499
        %v505 = vmul.f32 %v436, %v499
        %v506 = vmul.f32 %v441, %v499
        %v507 = vmul.f32 %v446, %v499
        %v508 = vmul.f32 %v451, %v499
        %v509 = vmul.f32 %v456, %v499
        %v510 = vmul.f32 %v461, %v499
        %v511 = vmul.f32 %v466, %v499
        %v512 = vmul.f32 %v471, %v499
        %v513 = vmul.f32 %v476, %v499
        %v514 = vmul.f32 %v481, %v499
        %v515 = vmul.f32 %v486, %v499
        %v516 = vmul.f32 %v491, %v499
        %517 = vadd.xlane.f32.xlu0 %v501
        %v518 = vpop.xlane.xlu0 %517
        %519 = vadd.xlane.f32.xlu0 %v502
        %v520 = vpop.xlane.xlu0 %519
        %521 = vadd.xlane.f32.xlu0 %v503
        %v522 = vpop.xlane.xlu0 %521
        %523 = vadd.xlane.f32.xlu0 %v504
        %v524 = vpop.xlane.xlu0 %523
        %525 = vadd.xlane.f32.xlu0 %v505
        %v526 = vpop.xlane.xlu0 %525
        %527 = vadd.xlane.f32.xlu0 %v506
        %v528 = vpop.xlane.xlu0 %527
        %529 = vadd.xlane.f32.xlu0 %v507
        %v530 = vpop.xlane.xlu0 %529
        %531 = vadd.xlane.f32.xlu0 %v508
        %v532 = vpop.xlane.xlu0 %531
        %533 = vadd.xlane.f32.xlu0 %v509
        %v534 = vpop.xlane.xlu0 %533
        %535 = vadd.xlane.f32.xlu0 %v510
        %v536 = vpop.xlane.xlu0 %535
        %537 = vadd.xlane.f32.xlu0 %v511
        %v538 = vpop.xlane.xlu0 %537
        %539 = vadd.xlane.f32.xlu0 %v512
        %v540 = vpop.xlane.xlu0 %539
        %541 = vadd.xlane.f32.xlu0 %v513
        %v542 = vpop.xlane.xlu0 %541
        %543 = vadd.xlane.f32.xlu0 %v514
        %v544 = vpop.xlane.xlu0 %543
        %545 = vadd.xlane.f32.xlu0 %v515
        %v546 = vpop.xlane.xlu0 %545
        %547 = vadd.xlane.f32.xlu0 %v516
        %v548 = vpop.xlane.xlu0 %547
        %vm549 = vcmask 7168
        %550 = vst.msk [vmem:[%s272] sm:$0xff] %vm549, %v518
        %551 = vst.msk [vmem:[%s272 + $0x8] sm:$0xff] %vm549, %v520
        %552 = vst.msk [vmem:[%s272 + $0x10] sm:$0xff] %vm549, %v522
        %553 = vst.msk [vmem:[%s272 + $0x18] sm:$0xff] %vm549, %v524
        %554 = vst.msk [vmem:[%s272 + $0x20] sm:$0xff] %vm549, %v526
        %555 = vst.msk [vmem:[%s272 + $0x28] sm:$0xff] %vm549, %v528
        %556 = vst.msk [vmem:[%s272 + $0x30] sm:$0xff] %vm549, %v530
        %557 = vst.msk [vmem:[%s272 + $0x38] sm:$0xff] %vm549, %v532
        %558 = vst.msk [vmem:[%s272 + $0x40] sm:$0xff] %vm549, %v534
        %559 = vst.msk [vmem:[%s272 + $0x48] sm:$0xff] %vm549, %v536
        %560 = vst.msk [vmem:[%s272 + $0x50] sm:$0xff] %vm549, %v538
        %561 = vst.msk [vmem:[%s272 + $0x58] sm:$0xff] %vm549, %v540
        %562 = vst.msk [vmem:[%s272 + $0x60] sm:$0xff] %vm549, %v542
        %563 = vst.msk [vmem:[%s272 + $0x68] sm:$0xff] %vm549, %v544
        %564 = vst.msk [vmem:[%s272 + $0x70] sm:$0xff] %vm549, %v546
        %565 = vst.msk [vmem:[%s272 + $0x78] sm:$0xff] %vm549, %v548
        %v566 = vld [vmem:[%s3] sm:$0x1]
        %v568 = vlaneseq
        %v569 = vshrl.u32 %v568, 7
        %v570 = vsub.s32 0, %v569
        %v571 = vrot.slane %v566, %v570
        %v573 = vmul.f32 %v416, %v571
        %v574 = vmul.f32 %v421, %v571
        %v575 = vmul.f32 %v426, %v571
        %v576 = vmul.f32 %v431, %v571
        %v577 = vmul.f32 %v436, %v571
        %v578 = vmul.f32 %v441, %v571
        %v579 = vmul.f32 %v446, %v571
        %v580 = vmul.f32 %v451, %v571
        %v581 = vmul.f32 %v456, %v571
        %v582 = vmul.f32 %v461, %v571
        %v583 = vmul.f32 %v466, %v571
        %v584 = vmul.f32 %v471, %v571
        %v585 = vmul.f32 %v476, %v571
        %v586 = vmul.f32 %v481, %v571
        %v587 = vmul.f32 %v486, %v571
        %v588 = vmul.f32 %v491, %v571
        %589 = vadd.xlane.f32.xlu0 %v573
        %v590 = vpop.xlane.xlu0 %589
        %591 = vadd.xlane.f32.xlu0 %v574
        %v592 = vpop.xlane.xlu0 %591
        %593 = vadd.xlane.f32.xlu0 %v575
        %v594 = vpop.xlane.xlu0 %593
        %595 = vadd.xlane.f32.xlu0 %v576
        %v596 = vpop.xlane.xlu0 %595
        %597 = vadd.xlane.f32.xlu0 %v577
        %v598 = vpop.xlane.xlu0 %597
        %599 = vadd.xlane.f32.xlu0 %v578
        %v600 = vpop.xlane.xlu0 %599
        %601 = vadd.xlane.f32.xlu0 %v579
        %v602 = vpop.xlane.xlu0 %601
        %603 = vadd.xlane.f32.xlu0 %v580
        %v604 = vpop.xlane.xlu0 %603
        %605 = vadd.xlane.f32.xlu0 %v581
        %v606 = vpop.xlane.xlu0 %605
        %607 = vadd.xlane.f32.xlu0 %v582
        %v608 = vpop.xlane.xlu0 %607
        %609 = vadd.xlane.f32.xlu0 %v583
        %v610 = vpop.xlane.xlu0 %609
        %611 = vadd.xlane.f32.xlu0 %v584
        %v612 = vpop.xlane.xlu0 %611
        %613 = vadd.xlane.f32.xlu0 %v585
        %v614 = vpop.xlane.xlu0 %613
        %615 = vadd.xlane.f32.xlu0 %v586
        %v616 = vpop.xlane.xlu0 %615
        %617 = vadd.xlane.f32.xlu0 %v587
        %v618 = vpop.xlane.xlu0 %617
        %619 = vadd.xlane.f32.xlu0 %v588
        %v620 = vpop.xlane.xlu0 %619
        %621 = vst.msk [vmem:[%s278] sm:$0xff] %vm549, %v590
        %622 = vst.msk [vmem:[%s278 + $0x8] sm:$0xff] %vm549, %v592
        %623 = vst.msk [vmem:[%s278 + $0x10] sm:$0xff] %vm549, %v594
        %624 = vst.msk [vmem:[%s278 + $0x18] sm:$0xff] %vm549, %v596
        %625 = vst.msk [vmem:[%s278 + $0x20] sm:$0xff] %vm549, %v598
        %626 = vst.msk [vmem:[%s278 + $0x28] sm:$0xff] %vm549, %v600
        %627 = vst.msk [vmem:[%s278 + $0x30] sm:$0xff] %vm549, %v602
        %628 = vst.msk [vmem:[%s278 + $0x38] sm:$0xff] %vm549, %v604
        %629 = vst.msk [vmem:[%s278 + $0x40] sm:$0xff] %vm549, %v606
        %630 = vst.msk [vmem:[%s278 + $0x48] sm:$0xff] %vm549, %v608
        %631 = vst.msk [vmem:[%s278 + $0x50] sm:$0xff] %vm549, %v610
        %632 = vst.msk [vmem:[%s278 + $0x58] sm:$0xff] %vm549, %v612
        %633 = vst.msk [vmem:[%s278 + $0x60] sm:$0xff] %vm549, %v614
        %634 = vst.msk [vmem:[%s278 + $0x68] sm:$0xff] %vm549, %v616
        %635 = vst.msk [vmem:[%s278 + $0x70] sm:$0xff] %vm549, %v618
        %636 = vst.msk [vmem:[%s278 + $0x78] sm:$0xff] %vm549, %v620
        %v637 = vpack.c.bf16 %v421, %v416
        %v638 = vpack.c.bf16 %v431, %v426
        %v639 = vpack.c.bf16 %v441, %v436
        %v640 = vpack.c.bf16 %v451, %v446
        %v641 = vpack.c.bf16 %v461, %v456
        %v642 = vpack.c.bf16 %v471, %v466
        %v643 = vpack.c.bf16 %v481, %v476
        %v644 = vpack.c.bf16 %v491, %v486
        %v653 = vunpack.c.l.b16 %v637
        %v654 = vunpack.c.h.b16 %v637
        %v655 = vunpack.c.l.b16 %v638
        %v656 = vunpack.c.h.b16 %v638
        %v657 = vunpack.c.l.b16 %v639
        %v658 = vunpack.c.h.b16 %v639
        %v659 = vunpack.c.l.b16 %v640
        %v660 = vunpack.c.h.b16 %v640
        %v661 = vunpack.c.l.b16 %v641
        %v662 = vunpack.c.h.b16 %v641
        %v663 = vunpack.c.l.b16 %v642
        %v664 = vunpack.c.h.b16 %v642
        %v665 = vunpack.c.l.b16 %v643
        %v666 = vunpack.c.h.b16 %v643
        %v667 = vunpack.c.l.b16 %v644
        %v668 = vunpack.c.h.b16 %v644
        %v669 = vpack.c.b16 %v653, %v653
        %v670 = vpack.c.b16 %v654, %v654
        %v671 = vpack.c.b16 %v655, %v655
        %v672 = vpack.c.b16 %v656, %v656
        %v673 = vpack.c.b16 %v657, %v657
        %v674 = vpack.c.b16 %v658, %v658
        %v675 = vpack.c.b16 %v659, %v659
        %v676 = vpack.c.b16 %v660, %v660
        %v677 = vpack.c.b16 %v661, %v661
        %v678 = vpack.c.b16 %v662, %v662
        %v679 = vpack.c.b16 %v663, %v663
        %v680 = vpack.c.b16 %v664, %v664
        %v681 = vpack.c.b16 %v665, %v665
        %v682 = vpack.c.b16 %v666, %v666
        %v683 = vpack.c.b16 %v667, %v667
        %v684 = vpack.c.b16 %v668, %v668
        %701 = vst [vmem:[%s246] sm:$0xf] %v669
        %702 = vst [vmem:[%s246 + $0x4] sm:$0xf] %v670
        %703 = vst [vmem:[%s246 + $0x8] sm:$0xf] %v671
        %704 = vst [vmem:[%s246 + $0xc] sm:$0xf] %v672
        %705 = vst [vmem:[%s246 + $0x10] sm:$0xf] %v673
        %706 = vst [vmem:[%s246 + $0x14] sm:$0xf] %v674
        %707 = vst [vmem:[%s246 + $0x18] sm:$0xf] %v675
        %708 = vst [vmem:[%s246 + $0x1c] sm:$0xf] %v676
        %709 = vst [vmem:[%s246 + $0x20] sm:$0xf] %v677
        %710 = vst [vmem:[%s246 + $0x24] sm:$0xf] %v678
        %711 = vst [vmem:[%s246 + $0x28] sm:$0xf] %v679
        %712 = vst [vmem:[%s246 + $0x2c] sm:$0xf] %v680
        %713 = vst [vmem:[%s246 + $0x30] sm:$0xf] %v681
        %714 = vst [vmem:[%s246 + $0x34] sm:$0xf] %v682
        %715 = vst [vmem:[%s246 + $0x38] sm:$0xf] %v683
        %716 = vst [vmem:[%s246 + $0x3c] sm:$0xf] %v684
        %s717 = sand.u32 %s118, 1
        %s718 = scalar_lea.sflag [#allocation3], %s717
        %s719 = sand.u32 %s118, 1
        %s720 = smul.addr %s719, 64
        %s721 = scalar_lea.vmem [#allocation2], %s720
        %s722 = smul.u32 16, %s21
        %p723 = scmp.lt.s32.totalorder %s722, 31
        %s724 = scalar_select %p723, %s722, 31
        %s725 = smul.addr %s724, 8
        %s726 = scalar_lea.vmem %s5, %s725
        %s727 = smul.u32 16, %s21
        %p728 = scmp.lt.s32.totalorder %s727, 31
        %s729 = scalar_select %p728, %s727, 31
        %s730 = smul.addr %s729, 8
        %s731 = scalar_lea.vmem %s6, %s730
        // Predicated region
        $region37: #{tpu_custom_call.1} parent=35 // pred_check
          %p732 = pneg %p128
        $region38: #{tpu_custom_call.1} parent=35 // pred_check_branch
          %734 = sbr.rel (%p732) target = $region40
        $region39: #{tpu_custom_call.1} parent=35 // pred_region
          %s735 = smul.u32 16, %s21
          %s737 = ssub.s32 1024, 1024
          %738 = vsyncadd %s718, %s737
          %s739 = smul.addr %s735, 64
          %s740 = scalar_lea.hbm %s4, %s739
          %s741 = sshll.u32 %s721, 4
          %s742 = int_to_ptr.vmem [resolvable:$true] %s741
          %747 = dma.vmem_to_hbm [thread:$0]  %s742, 1024, %s740, %s718, 64, 64, 4
        $region40: #{tpu_custom_call.1} parent=35 // pred_fallthru
          _
        // Predicated region
        $region41: #{tpu_custom_call.1} parent=35 // pred_check
          %p748 = pneg %p154
        $region42: #{tpu_custom_call.1} parent=35 // pred_check_branch
          %750 = sbr.rel (%p748) target = $region44
        $region43: #{tpu_custom_call.1} parent=35 // pred_region
          %s751 = smul.u32 16, %s21
        $region44: #{tpu_custom_call.1} parent=35 // pred_fallthru
          _
        // Predicated region
        $region45: #{tpu_custom_call.1} parent=35 // pred_check
          %p752 = pneg %p180
        $region46: #{tpu_custom_call.1} parent=35 // pred_check_branch
          %754 = sbr.rel (%p752) target = $region48
        $region47: #{tpu_custom_call.1} parent=35 // pred_region
          %s755 = smul.u32 16, %s21
        $region48: #{tpu_custom_call.1} parent=35 // pred_fallthru
          _
      $region36: #{tpu_custom_call.1} parent=5 // pred_fallthru
        _
      %p756 = scmp.le.s32.totalorder 2, %s16
      // Predicated region
      $region49: #{tpu_custom_call.1} parent=5 // pred_check
        %p757 = pneg %p756
      $region50: #{tpu_custom_call.1} parent=5 // pred_check_branch
        %759 = sbr.rel (%p757) target = $region52
      $region51: #{tpu_custom_call.1} parent=5 // pred_region
        %s760 = ssub.s32 %s16, 2
        // Predicated region
        $region53: #{tpu_custom_call.1} parent=51 // pred_check
          %p761 = pneg %p134
        $region54: #{tpu_custom_call.1} parent=51 // pred_check_branch
          %763 = sbr.rel (%p761) target = $region56
        $region55: #{tpu_custom_call.1} parent=51 // pred_region
          %s764 = sand.u32 %s119, 1
          %s765 = scalar_lea.sflag [#allocation3], %s764
          %s766 = sand.u32 %s119, 1
          %s767 = smul.addr %s766, 64
          %s768 = scalar_lea.vmem [#allocation2], %s767
          %769 = dma.done %s765, 1024
        $region56: #{tpu_custom_call.1} parent=51 // pred_fallthru
          _
        // Predicated region
        $region57: #{tpu_custom_call.1} parent=51 // pred_check
          %p770 = pneg %p160
        $region58: #{tpu_custom_call.1} parent=51 // pred_check_branch
          %772 = sbr.rel (%p770) target = $region60
        $region59: #{tpu_custom_call.1} parent=51 // pred_region
          %s773 = smul.u32 16, %s22
          %p774 = scmp.lt.s32.totalorder %s773, 31
          %s775 = scalar_select %p774, %s773, 31
          %s776 = smul.addr %s775, 8
          %s777 = scalar_lea.vmem %s5, %s776
        $region60: #{tpu_custom_call.1} parent=51 // pred_fallthru
          _
        // Predicated region
        $region61: #{tpu_custom_call.1} parent=51 // pred_check
          %p778 = pneg %p186
        $region62: #{tpu_custom_call.1} parent=51 // pred_check_branch
          %780 = sbr.rel (%p778) target = $region64
        $region63: #{tpu_custom_call.1} parent=51 // pred_region
          %s781 = smul.u32 16, %s22
          %p782 = scmp.lt.s32.totalorder %s781, 31
          %s783 = scalar_select %p782, %s781, 31
          %s784 = smul.addr %s783, 8
          %s785 = scalar_lea.vmem %s6, %s784
        $region64: #{tpu_custom_call.1} parent=51 // pred_fallthru
          _
      $region52: #{tpu_custom_call.1} parent=5 // pred_fallthru
        _
    $region6: #{tpu_custom_call.1} parent=1 // loop_footer
      %s20 = sadd.s32 1, %s16
    $region7: #{tpu_custom_call.1} parent=1 // loop_footer_branch
      %15 = sbr.rel target = $region3
    $region8: #{tpu_custom_call.1} parent=1 // loop_exit
      _
    %786 = vsyncpa [#allocation3], 1
    %s787 = scalar_lea.sflag [#allocation3], 1
    %788 = vsyncpa %s787, 1

</llo_original>
